<compile_context>
chip_gen: v7x
topology: tpu7x:2x2x1
jax: 0.10.0
libtpu: 0.0.40
codegen_flags: <defaults>
</compile_context>

<pallas_src>
import jax
import jax.numpy as jnp
from jax.experimental import pallas as pl
from jax.experimental.pallas import tpu as pltpu


def _round_up(v, m):
    return ((v + m - 1) // m) * m


def _tta_linear_kernel(x_ref, w_ref, b_ref, o_ref, acc_ref):
    # x_ref : [tm, tk] bf16
    # w_ref : [tk, tn] bf16   (TTA-folded weights)
    # b_ref : [1,  tn] f32
    # o_ref : [tm, tn] f32
    # acc   : [tm, tn] f32 scratch, resident across the reduction axis
    kk = pl.program_id(2)

    @pl.when(kk == 0)
    def _init():
        acc_ref[...] = jnp.zeros_like(acc_ref)

    acc_ref[...] += jnp.dot(
        x_ref[...], w_ref[...], preferred_element_type=jnp.float32
    )

    @pl.when(kk == pl.num_programs(2) - 1)
    def _finalize():
        o_ref[...] = (acc_ref[...] + b_ref[...]).astype(o_ref.dtype)


def _vmem_limit_bytes(tm, tn, tk):
    # Double-buffered input/output tiles + accumulator, with headroom,
    # capped well under v7x's 64 MiB physical VMEM per TensorCore.
    x_tile = tm * tk * 2          # bf16
    w_tile = tk * tn * 2          # bf16
    b_tile = 8 * tn * 4           # (1, tn) pads to 8 sublanes
    o_tile = tm * tn * 4
    need = 2 * (x_tile + w_tile + b_tile + o_tile) + tm * tn * 4
    return int(min(max(2 * need, 8 << 20), 48 << 20))


def tta_wrapper_forward(x_nchw, w, b, *, tm=128, tn=256, tk=512):
    """Forward pass of TTAWrapper(linear_model, hflip_tta).

    x_nchw: [N, C, H, W] float32
    w     : [C*H*W, K]   float32
    b     : [K]          float32
    returns [N, K] float32
    """
    n, c, h, wdim = x_nchw.shape
    d = c * h * wdim
    k = w.shape[1]

    # ---- Fold the hflip-TTA average into the weights (model is linear) ----
    #   0.5*(model(x) + model(flip(x))) = x @ (0.5*(W + W[perm])) + b
    perm = jnp.flip(
        jnp.arange(d, dtype=jnp.int32).reshape(c, h, wdim), axis=-1
    ).reshape(-1)
    w_eff = (0.5 * (w + w[perm, :])).astype(jnp.bfloat16)
    x_flat = x_nchw.reshape(n, d).astype(jnp.bfloat16)
    b2d = b.reshape(1, k).astype(jnp.float32)

    # ---- Tile plan: clamp to (8, 128)-aligned tiles, pad, slice back ----
    tm = min(tm, _round_up(n, 8))
    tn = min(tn, _round_up(k, 128))
    tk = min(tk, _round_up(d, 128))

    n_pad = _round_up(n, tm)
    k_pad = _round_up(k, tn)
    d_pad = _round_up(d, tk)

    x_p = jnp.pad(x_flat, ((0, n_pad - n), (0, d_pad - d)))
    w_p = jnp.pad(w_eff, ((0, d_pad - d), (0, k_pad - k)))
    b_p = jnp.pad(b2d, ((0, 0), (0, k_pad - k)))

    grid = (n_pad // tm, k_pad // tn, d_pad // tk)

    out = pl.pallas_call(
        _tta_linear_kernel,
        out_shape=jax.ShapeDtypeStruct((n_pad, k_pad), jnp.float32),
        grid_spec=pltpu.PrefetchScalarGridSpec(
            num_scalar_prefetch=0,
            grid=grid,
            in_specs=[
                pl.BlockSpec((tm, tk), lambda i, j, kk: (i, kk)),
                pl.BlockSpec((tk, tn), lambda i, j, kk: (kk, j)),
                pl.BlockSpec((1, tn), lambda i, j, kk: (0, j)),
            ],
            out_specs=pl.BlockSpec((tm, tn), lambda i, j, kk: (i, j)),
            scratch_shapes=[pltpu.VMEM((tm, tn), jnp.float32)],
        ),
        compiler_params=pltpu.CompilerParams(
            dimension_semantics=("parallel", "parallel", "arbitrary"),
            vmem_limit_bytes=_vmem_limit_bytes(tm, tn, tk),
        ),
    )(x_p, w_p, b_p)

    return out[:n, :k]


def reference_forward(x_nchw, w, b):
    """Pure-JAX f32 reference of tta_function(model, x) for verification."""
    n = x_nchw.shape[0]

    def model(inp):
        return inp.reshape(n, -1) @ w + b

    return 0.5 * (model(x_nchw) + model(jnp.flip(x_nchw, axis=-1)))


if __name__ == "__main__":
    key = jax.random.PRNGKey(0)
    kx, kw, kb = jax.random.split(key, 3)

    N, C, H, W = 2, 4, 16, 16
    K = 8  # number of classes
    D = C * H * W

    x = jax.random.normal(kx, (N, C, H, W), dtype=jnp.float32)
    w_param = jax.random.normal(kw, (D, K), dtype=jnp.float32) * 0.02
    b_param = jax.random.normal(kb, (K,), dtype=jnp.float32) * 0.01

    out = tta_wrapper_forward(x, w_param, b_param)
    out = jax.block_until_ready(out)

    ref = reference_forward(x, w_param, b_param)
    assert out.shape == (N, K)
    # bf16 operands (f32 accumulation) vs. the pure-f32 reference.
    assert jnp.allclose(out, ref, atol=2e-2, rtol=2e-2), "mismatch vs reference"

    print("KERNEL_OK")
</pallas_src>

<mosaic_0001>
module attributes {stable_mosaic.version = 11 : i64} {
  func.func @_tta_linear_kernel(%arg0: i32, %arg1: i32, %arg2: i32, %arg3: memref<8x512xbf16, #tpu.memory_space<vmem>>, %arg4: memref<512x128xbf16, #tpu.memory_space<vmem>>, %arg5: memref<1x128xf32, #tpu.memory_space<vmem>>, %arg6: memref<8x128xf32, #tpu.memory_space<vmem>>, %arg7: memref<8x128xf32, #tpu.memory_space<vmem>>) attributes {dimension_semantics = [#tpu.dimension_semantics<parallel>, #tpu.dimension_semantics<parallel>, #tpu.dimension_semantics<arbitrary>], iteration_bounds = array<i64: 1, 1, 2>, scalar_prefetch = 0 : i64, scratch_operands = 1 : i64, tpu.core_type = #tpu.core_type<tc>, window_params = [{transform_indices = @transform_0, window_bounds = array<i64: 8, 512>}, {transform_indices = @transform_1, window_bounds = array<i64: 512, 128>}, {transform_indices = @transform_2, window_bounds = array<i64: 1, 128>}, {transform_indices = @transform_3, window_bounds = array<i64: 8, 128>}]} {
    %c0_i32 = arith.constant 0 : i32
    %0 = arith.cmpi eq, %arg2, %c0_i32 : i32
    %1 = arith.extui %0 : i1 to i32
    %c0_i32_0 = arith.constant 0 : i32
    %2 = arith.cmpi ne, %1, %c0_i32_0 : i32
    scf.if %2 {
      %cst_9 = arith.constant 0.000000e+00 : f32
      %12 = vector.broadcast %cst_9 : f32 to vector<8x128xf32>
      %c0_10 = arith.constant 0 : index
      %c0_11 = arith.constant 0 : index
      %13 = vector.load %arg7[%c0_10, %c0_11] : memref<8x128xf32, #tpu.memory_space<vmem>>, vector<8x128xf32>
      tpu.vector_store %arg7[%c0_10, %c0_11], %12 {strides = array<i32>} : memref<8x128xf32, #tpu.memory_space<vmem>>, vector<8x128xf32>,
    } else {
    }
    %c0 = arith.constant 0 : index
    %c0_1 = arith.constant 0 : index
    %3 = vector.load %arg7[%c0, %c0_1] : memref<8x128xf32, #tpu.memory_space<vmem>>, vector<8x128xf32>
    %c0_2 = arith.constant 0 : index
    %c0_3 = arith.constant 0 : index
    %4 = vector.load %arg3[%c0_2, %c0_3] : memref<8x512xbf16, #tpu.memory_space<vmem>>, vector<8x512xbf16>
    %c0_4 = arith.constant 0 : index
    %c0_5 = arith.constant 0 : index
    %5 = vector.load %arg4[%c0_4, %c0_5] : memref<512x128xbf16, #tpu.memory_space<vmem>>, vector<512x128xbf16>
    %cst = arith.constant dense<0.000000e+00> : vector<8x128xf32>
    %6 = tpu.matmul %4, %5, %cst {dimension_numbers = #tpu.dot_dimension_numbers<[1], [0], [0], [1], [0, 0, 1, 1], [], []>} : vector<8x512xbf16>, vector<512x128xbf16>, vector<8x128xf32> -> vector<8x128xf32>
    %7 = arith.addf %3, %6 : vector<8x128xf32>
    %c0_6 = arith.constant 0 : index
    %c0_7 = arith.constant 0 : index
    %8 = vector.load %arg7[%c0_6, %c0_7] : memref<8x128xf32, #tpu.memory_space<vmem>>, vector<8x128xf32>
    tpu.vector_store %arg7[%c0_6, %c0_7], %7 {strides = array<i32>} : memref<8x128xf32, #tpu.memory_space<vmem>>, vector<8x128xf32>,
    %c1_i32 = arith.constant 1 : i32
    %9 = arith.cmpi eq, %arg2, %c1_i32 : i32
    %10 = arith.extui %9 : i1 to i32
    %c0_i32_8 = arith.constant 0 : i32
    %11 = arith.cmpi ne, %10, %c0_i32_8 : i32
    scf.if %11 {
      %c0_9 = arith.constant 0 : index
      %c0_10 = arith.constant 0 : index
      %12 = vector.load %arg7[%c0_9, %c0_10] : memref<8x128xf32, #tpu.memory_space<vmem>>, vector<8x128xf32>
      %c0_11 = arith.constant 0 : index
      %c0_12 = arith.constant 0 : index
      %13 = vector.load %arg5[%c0_11, %c0_12] : memref<1x128xf32, #tpu.memory_space<vmem>>, vector<1x128xf32>
      %14 = vector.broadcast %13 : vector<1x128xf32> to vector<8x128xf32>
      %15 = arith.addf %12, %14 : vector<8x128xf32>
      %c0_13 = arith.constant 0 : index
      %c0_14 = arith.constant 0 : index
      %16 = vector.load %arg6[%c0_13, %c0_14] : memref<8x128xf32, #tpu.memory_space<vmem>>, vector<8x128xf32>
      tpu.vector_store %arg6[%c0_13, %c0_14], %15 {strides = array<i32>} : memref<8x128xf32, #tpu.memory_space<vmem>>, vector<8x128xf32>,
    } else {
    }
    return
  }
  func.func @transform_0(%arg0: i32, %arg1: i32, %arg2: i32) -> (i32, i32) {
    %c0_i32 = arith.constant 0 : i32
    return %arg0, %arg2 : i32, i32
  }
  func.func @transform_1(%arg0: i32, %arg1: i32, %arg2: i32) -> (i32, i32) {
    %c0_i32 = arith.constant 0 : i32
    return %arg2, %arg1 : i32, i32
  }
  func.func @transform_2(%arg0: i32, %arg1: i32, %arg2: i32) -> (i32, i32) {
    %c0_i32 = arith.constant 0 : i32
    %c0_i32_0 = arith.constant 0 : i32
    return %c0_i32, %arg1 : i32, i32
  }
  func.func @transform_3(%arg0: i32, %arg1: i32, %arg2: i32) -> (i32, i32) {
    %c0_i32 = arith.constant 0 : i32
    return %arg0, %arg1 : i32, i32
  }
}

</mosaic_0001>

<llo_original>
// kernel: tpu_custom_call.1
$region0: #{tpu_custom_call.1}
  #allocation0 [shape = 'u32[]', space=smem, size = 0x4, offset = 0x4, fixed_abs, tag = 'smem constant byte address 0x4 - core index']
  #allocation1 [shape = 'u32[144,128]{1,0:T(1,128)}', space=vmem, size = 0x12000, scoped, tag = 'internal scratch']
  #allocation2 [shape = 'f32[8,128]{1,0:T(8,128)}', space=vmem, size = 0x1000, scoped, tag = 'scratch operand']
  %s0 = inlined_call_operand.hbm [shape: bf16[8,1024], index: 0, kind: input, shape index: {}]
  %s1 = inlined_call_operand.hbm [shape: bf16[1024,128], index: 1, kind: input, shape index: {}]
  %s2 = inlined_call_operand.vmem [shape: f32[1,128], index: 2, kind: input, shape index: {}]
  %s3 = inlined_call_operand.hbm [shape: f32[8,128], index: 3, kind: output, shape index: {}]
  %s4 = sld [smem:[#allocation0]]
  $region61: #{tpu_custom_call.1} parent=0
    _
  %s6 = ssub.s32 1, %s4
  %s7 = scalar_select 0, %s6, %s4
  $region1: #{tpu_custom_call.1} parent=0
    #allocation3 [shape = 'u8[16384]{0}', space=vmem, size = 0x4000, scoped, tag = 'input window, operand 0']
    #allocation4 [shape = 's32[2]{0}', space=sflag, size = 0x8, scoped, tag = 'scoped memory for tpu_custom_call.1']
    #allocation5 [shape = 's32[2]{0}', space=sflag, size = 0x8, scoped, tag = 'scoped memory for tpu_custom_call.1']
    #allocation6 [shape = 'u8[262144]{0}', space=vmem, size = 0x40000, scoped, tag = 'input window, operand 1']
    #allocation7 [shape = 's32[2]{0}', space=sflag, size = 0x8, scoped, tag = 'scoped memory for tpu_custom_call.1']
    #allocation8 [shape = 'u8[4096]{0}', space=vmem, size = 0x1000, scoped, tag = 'output window, operand 0, single buffered']
    %8 = vsyncpa [#allocation4], 0
    %s9 = scalar_lea.sflag [#allocation4], 1
    %10 = vsyncpa %s9, 0
    %11 = vsyncpa [#allocation7], 0
    %s12 = scalar_lea.sflag [#allocation7], 1
    %13 = vsyncpa %s12, 0
    %14 = vsyncpa [#allocation5], 0
    loop: start=0, step=1, limit=4
    $region2: #{tpu_custom_call.1} parent=1 // loop_pre_header
      _
    $region3: #{tpu_custom_call.1} parent=1 // loop_header
      %s16 = sphi 0, %s20
      %p17 = scmp.ge.s32.totalorder %s16, 4
      %s23 = sphi 0, %s42
      %s24 = sphi 0, %s38
      %s25 = sphi 0, %s34
      %s26 = sphi 0, %s23
      %s27 = sphi 0, %s24
      %s28 = sphi 0, %s25
      %s29 = sphi 0, %s26
      %s30 = sphi 0, %s27
      %s31 = sphi 0, %s28
      %s47 = sphi 0, %s49
      %s50 = sphi 0, %s47
      %s51 = sphi 0, %s50
      %s67 = sphi 0, %s51
      %s75 = sphi 0, %s77
      %s78 = sphi 0, %s75
      %s79 = sphi 0, %s78
      %s95 = sphi 0, %s79
      %s101 = sphi 0, %s103
      %s104 = sphi 0, %s101
      %s105 = sphi 0, %s104
      %s121 = sphi 0, %s105
      %s129 = sphi 0, %s131
      %s132 = sphi 0, %s129
      %s133 = sphi 0, %s132
      %s149 = sphi 0, %s133
    $region4: #{tpu_custom_call.1} parent=1 // loop_header_branch
      %19 = sbr.rel (%p17) target = $region8
    $region5: #{tpu_custom_call.1} parent=1 // loop_body
      %s21 = ssub.s32 %s16, 1
      %s22 = ssub.s32 %s16, 2
      %s32 = sadd.s32 1, %s25
      %p33 = scmp.ge.s32.totalorder %s32, 2
      %s34 = scalar_select %p33, 0, %s32
      %s35 = sadd.s32 1, %s24
      %s36 = scalar_select %p33, %s35, %s24
      %p37 = scmp.ge.s32.totalorder %s36, 1
      %s38 = scalar_select %p37, 0, %s36
      %s39 = sadd.s32 1, %s23
      %s40 = scalar_select %p37, %s39, %s23
      %p41 = scmp.ge.s32.totalorder %s40, 1
      %s42 = scalar_select %p41, 0, %s40
      %s43 = ssub.s32 %s23, %s42
      %s44 = ssub.s32 %s25, %s34
      %s45 = sor.u32 %s43, %s44
      %p46 = scmp.eq.s32.totalorder %s45, 0
      %s48 = sadd.s32 %s47, 1
      %s49 = scalar_select %p46, %s47, %s48
      %p52 = pneg %p46
      %p53 = scmp.eq.s32.totalorder %s16, 1
      %p54 = por %p52, %p53
      %p55 = scmp.ne.s32.totalorder %s47, %s50
      %p56 = scmp.eq.s32.totalorder %s16, 0
      %p57 = por %p55, %p56
      %p58 = scmp.ne.s32.totalorder %s47, %s50
      %p59 = scmp.eq.s32.totalorder %s21, 1
      %p60 = por %p58, %p59
      %p61 = scmp.ne.s32.totalorder %s50, %s51
      %p62 = scmp.eq.s32.totalorder %s21, 0
      %p63 = por %p61, %p62
      %p64 = scmp.ne.s32.totalorder %s50, %s51
      %p65 = scmp.eq.s32.totalorder %s22, 1
      %p66 = por %p64, %p65
      %p68 = scmp.ne.s32.totalorder %s51, %s67
      %p69 = scmp.eq.s32.totalorder %s22, 0
      %p70 = por %p68, %p69
      %s71 = ssub.s32 %s25, %s34
      %s72 = ssub.s32 %s24, %s38
      %s73 = sor.u32 %s71, %s72
      %p74 = scmp.eq.s32.totalorder %s73, 0
      %s76 = sadd.s32 %s75, 1
      %s77 = scalar_select %p74, %s75, %s76
      %p80 = pneg %p74
      %p81 = scmp.eq.s32.totalorder %s16, 1
      %p82 = por %p80, %p81
      %p83 = scmp.ne.s32.totalorder %s75, %s78
      %p84 = scmp.eq.s32.totalorder %s16, 0
      %p85 = por %p83, %p84
      %p86 = scmp.ne.s32.totalorder %s75, %s78
      %p87 = scmp.eq.s32.totalorder %s21, 1
      %p88 = por %p86, %p87
      %p89 = scmp.ne.s32.totalorder %s78, %s79
      %p90 = scmp.eq.s32.totalorder %s21, 0
      %p91 = por %p89, %p90
      %p92 = scmp.ne.s32.totalorder %s78, %s79
      %p93 = scmp.eq.s32.totalorder %s22, 1
      %p94 = por %p92, %p93
      %p96 = scmp.ne.s32.totalorder %s79, %s95
      %p97 = scmp.eq.s32.totalorder %s22, 0
      %p98 = por %p96, %p97
      %s99 = ssub.s32 %s24, %s38
      %p100 = scmp.eq.s32.totalorder %s99, 0
      %s102 = sadd.s32 %s101, 1
      %s103 = scalar_select %p100, %s101, %s102
      %p106 = pneg %p100
      %p107 = scmp.eq.s32.totalorder %s16, 1
      %p108 = por %p106, %p107
      %p109 = scmp.ne.s32.totalorder %s101, %s104
      %p110 = scmp.eq.s32.totalorder %s16, 0
      %p111 = por %p109, %p110
      %p112 = scmp.ne.s32.totalorder %s101, %s104
      %p113 = scmp.eq.s32.totalorder %s21, 1
      %p114 = por %p112, %p113
      %p115 = scmp.ne.s32.totalorder %s104, %s105
      %p116 = scmp.eq.s32.totalorder %s21, 0
      %p117 = por %p115, %p116
      %p118 = scmp.ne.s32.totalorder %s104, %s105
      %p119 = scmp.eq.s32.totalorder %s22, 1
      %p120 = por %p118, %p119
      %p122 = scmp.ne.s32.totalorder %s105, %s121
      %p123 = scmp.eq.s32.totalorder %s22, 0
      %p124 = por %p122, %p123
      %s125 = ssub.s32 %s23, %s42
      %s126 = ssub.s32 %s24, %s38
      %s127 = sor.u32 %s125, %s126
      %p128 = scmp.eq.s32.totalorder %s127, 0
      %s130 = sadd.s32 %s129, 1
      %s131 = scalar_select %p128, %s129, %s130
      %p134 = pneg %p128
      %p135 = scmp.eq.s32.totalorder %s16, 1
      %p136 = por %p134, %p135
      %p137 = scmp.ne.s32.totalorder %s129, %s132
      %p138 = scmp.eq.s32.totalorder %s16, 0
      %p139 = por %p137, %p138
      %p140 = scmp.ne.s32.totalorder %s129, %s132
      %p141 = scmp.eq.s32.totalorder %s21, 1
      %p142 = por %p140, %p141
      %p143 = scmp.ne.s32.totalorder %s132, %s133
      %p144 = scmp.eq.s32.totalorder %s21, 0
      %p145 = por %p143, %p144
      %p146 = scmp.ne.s32.totalorder %s132, %s133
      %p147 = scmp.eq.s32.totalorder %s22, 1
      %p148 = por %p146, %p147
      %p150 = scmp.ne.s32.totalorder %s133, %s149
      %p151 = scmp.eq.s32.totalorder %s22, 0
      %p152 = por %p150, %p151
      %p153 = scmp.le.s32.totalorder 1, %s16
      %p154 = scmp.lt.s32.totalorder %s16, 3
      %p155 = pnand %p153, %p154
      %p156 = pneg %p155
      // Predicated region
      $region9: #{tpu_custom_call.1} parent=5 // pred_check
        _
      $region10: #{tpu_custom_call.1} parent=5 // pred_check_branch
        %158 = sbr.rel (%p155) target = $region12
      $region11: #{tpu_custom_call.1} parent=5 // pred_region
        %s159 = ssub.s32 %s16, 1
        // Predicated region
        $region13: #{tpu_custom_call.1} parent=11 // pred_check
          %p160 = pneg %p117
        $region14: #{tpu_custom_call.1} parent=11 // pred_check_branch
          %162 = sbr.rel (%p160) target = $region16
        $region15: #{tpu_custom_call.1} parent=11 // pred_region
          %p163 = scmp.lt.s32.totalorder %s27, 0
          %s164 = scalar_select %p163, %s27, 0
          %s165 = scalar_lea.vmem %s2, %s164
        $region16: #{tpu_custom_call.1} parent=11 // pred_fallthru
          _
      $region12: #{tpu_custom_call.1} parent=5 // pred_fallthru
        _
      %p166 = scmp.lt.s32.totalorder %s16, 2
      // Predicated region
      $region17: #{tpu_custom_call.1} parent=5 // pred_check
        %p167 = pneg %p166
      $region18: #{tpu_custom_call.1} parent=5 // pred_check_branch
        %169 = sbr.rel (%p167) target = $region20
      $region19: #{tpu_custom_call.1} parent=5 // pred_region
        // Predicated region
        $region21: #{tpu_custom_call.1} parent=19 // pred_check
          %p170 = pneg %p57
        $region22: #{tpu_custom_call.1} parent=19 // pred_check_branch
          %172 = sbr.rel (%p170) target = $region24
        $region23: #{tpu_custom_call.1} parent=19 // pred_region
          %s173 = sand.u32 %s47, 1
          %s174 = scalar_lea.sflag [#allocation4], %s173
          %s175 = sand.u32 %s47, 1
          %s176 = smul.addr %s175, 16
          %s177 = scalar_lea.vmem [#allocation3], %s176
          %s178 = smul.u32 4, %s25
          %s180 = ssub.s32 256, 256
          %181 = vsyncadd %s174, %s180
          %s182 = smul.addr %s23, 8
          %s183 = sadd.s32 %s178, %s182
          %s184 = smul.addr %s183, 64
          %s185 = scalar_lea.hbm %s0, %s184
          %s187 = sshll.u32 %s177, 4
          %s188 = int_to_ptr.vmem [resolvable:$true] %s187
          %190 = dma.hbm_to_vmem [thread:$0]  %s185, 256, %s188, %s174
        $region24: #{tpu_custom_call.1} parent=19 // pred_fallthru
          _
        // Predicated region
        $region25: #{tpu_custom_call.1} parent=19 // pred_check
          %p191 = pneg %p85
        $region26: #{tpu_custom_call.1} parent=19 // pred_check_branch
          %193 = sbr.rel (%p191) target = $region28
        $region27: #{tpu_custom_call.1} parent=19 // pred_region
          %s194 = sand.u32 %s75, 1
          %s195 = scalar_lea.sflag [#allocation7], %s194
          %s196 = sand.u32 %s75, 1
          %s197 = smul.addr %s196, 256
          %s198 = scalar_lea.vmem [#allocation6], %s197
          %s199 = smul.u32 64, %s25
          %s201 = ssub.s32 4096, 4096
          %202 = vsyncadd %s195, %s201
          %s203 = sadd.s32 %s24, %s199
          %s204 = smul.addr %s203, 64
          %s205 = scalar_lea.hbm %s1, %s204
          %s206 = sshll.u32 %s198, 4
          %s207 = int_to_ptr.vmem [resolvable:$true] %s206
          %212 = dma.hbm_to_vmem [thread:$0]  %s205, 4096, %s207, %s195, 64, 64, 4
        $region28: #{tpu_custom_call.1} parent=19 // pred_fallthru
          _
      $region20: #{tpu_custom_call.1} parent=5 // pred_fallthru
        _
      %p213 = scmp.le.s32.totalorder 1, %s16
      %p214 = scmp.lt.s32.totalorder %s16, 3
      %p215 = pnand %p213, %p214
      %p216 = pneg %p215
      // Predicated region
      $region29: #{tpu_custom_call.1} parent=5 // pred_check
        _
      $region30: #{tpu_custom_call.1} parent=5 // pred_check_branch
        %218 = sbr.rel (%p215) target = $region32
      $region31: #{tpu_custom_call.1} parent=5 // pred_region
        %s219 = ssub.s32 %s16, 1
        %s220 = sand.u32 %s50, 1
        %s221 = scalar_lea.sflag [#allocation4], %s220
        %s222 = sand.u32 %s50, 1
        %s223 = smul.addr %s222, 16
        %s224 = scalar_lea.vmem [#allocation3], %s223
        // Predicated region
        $region33: #{tpu_custom_call.1} parent=31 // pred_check
          %p225 = pneg %p63
        $region34: #{tpu_custom_call.1} parent=31 // pred_check_branch
          %227 = sbr.rel (%p225) target = $region36
        $region35: #{tpu_custom_call.1} parent=31 // pred_region
          %228 = dma.done %s221, 256
        $region36: #{tpu_custom_call.1} parent=31 // pred_fallthru
          _
        %s229 = sand.u32 %s78, 1
        %s230 = scalar_lea.sflag [#allocation7], %s229
        %s231 = sand.u32 %s78, 1
        %s232 = smul.addr %s231, 256
        %s233 = scalar_lea.vmem [#allocation6], %s232
        // Predicated region
        $region37: #{tpu_custom_call.1} parent=31 // pred_check
          %p234 = pneg %p91
        $region38: #{tpu_custom_call.1} parent=31 // pred_check_branch
          %236 = sbr.rel (%p234) target = $region40
        $region39: #{tpu_custom_call.1} parent=31 // pred_region
          %237 = dma.done %s230, 4096
        $region40: #{tpu_custom_call.1} parent=31 // pred_fallthru
          _
        %s238 = sand.u32 %s50, 1
        %s239 = scalar_lea.sflag [#allocation4], %s238
        %s240 = sand.u32 %s50, 1
        %s241 = smul.addr %s240, 16
        %s242 = scalar_lea.vmem [#allocation3], %s241
        %p243 = pneg %p63
        %p244 = pneg %p60
        %s245 = sand.u32 %s78, 1
        %s246 = scalar_lea.sflag [#allocation7], %s245
        %s247 = sand.u32 %s78, 1
        %s248 = smul.addr %s247, 256
        %s249 = scalar_lea.vmem [#allocation6], %s248
        %p250 = pneg %p91
        %p251 = pneg %p88
        %p252 = scmp.lt.s32.totalorder %s27, 0
        %s253 = scalar_select %p252, %s27, 0
        %s254 = scalar_lea.vmem %s2, %s253
        %p255 = pneg %p117
        %p256 = pneg %p114
        %p257 = pneg %p145
        %p258 = pneg %p142
        %s259 = smul.u32 4, %s28
        %s260 = smul.u32 64, %s28
        %p261 = scmp.lt.s32.totalorder %s27, 0
        %s262 = scalar_select %p261, %s27, 0
        %s263 = scalar_lea.vmem %s2, %s262
        %p265 = scmp.eq.s32.totalorder %s28, 0
        // Predicated region
        $region41: #{tpu_custom_call.1} parent=31 // pred_check
          %p266 = pneg %p265
        $region42: #{tpu_custom_call.1} parent=31 // pred_check_branch
          %268 = sbr.rel (%p266) target = $region44
        $region43: #{tpu_custom_call.1} parent=31 // pred_region
          %269 = vst [vmem:[#allocation2] sm:$0xff] 0.0
        $region44: #{tpu_custom_call.1} parent=31 // pred_fallthru
          _
        %v270 = vld [vmem:[#allocation2] sm:$0xff]
        %v271 = vld [vmem:[%s224] sm:$0xff]
        %v272 = vld [vmem:[%s224 + $0x8] sm:$0xff]
        %v273 = vld [vmem:[%s233] sm:$0xf]
        %v274 = vld [vmem:[%s233 + $0x4] sm:$0xf]
        %v275 = vld [vmem:[%s233 + $0x8] sm:$0xf]
        %v276 = vld [vmem:[%s233 + $0xc] sm:$0xf]
        %v277 = vld [vmem:[%s233 + $0x10] sm:$0xf]
        %v278 = vld [vmem:[%s233 + $0x14] sm:$0xf]
        %v279 = vld [vmem:[%s233 + $0x18] sm:$0xf]
        %v280 = vld [vmem:[%s233 + $0x1c] sm:$0xf]
        %v281 = vld [vmem:[%s233 + $0x20] sm:$0xf]
        %v282 = vld [vmem:[%s233 + $0x24] sm:$0xf]
        %v283 = vld [vmem:[%s233 + $0x28] sm:$0xf]
        %v284 = vld [vmem:[%s233 + $0x2c] sm:$0xf]
        %v285 = vld [vmem:[%s233 + $0x30] sm:$0xf]
        %v286 = vld [vmem:[%s233 + $0x34] sm:$0xf]
        %v287 = vld [vmem:[%s233 + $0x38] sm:$0xf]
        %v288 = vld [vmem:[%s233 + $0x3c] sm:$0xf]
        %v289 = vld [vmem:[%s233 + $0x40] sm:$0xf]
        %v290 = vld [vmem:[%s233 + $0x44] sm:$0xf]
        %v291 = vld [vmem:[%s233 + $0x48] sm:$0xf]
        %v292 = vld [vmem:[%s233 + $0x4c] sm:$0xf]
        %v293 = vld [vmem:[%s233 + $0x50] sm:$0xf]
        %v294 = vld [vmem:[%s233 + $0x54] sm:$0xf]
        %v295 = vld [vmem:[%s233 + $0x58] sm:$0xf]
        %v296 = vld [vmem:[%s233 + $0x5c] sm:$0xf]
        %v297 = vld [vmem:[%s233 + $0x60] sm:$0xf]
        %v298 = vld [vmem:[%s233 + $0x64] sm:$0xf]
        %v299 = vld [vmem:[%s233 + $0x68] sm:$0xf]
        %v300 = vld [vmem:[%s233 + $0x6c] sm:$0xf]
        %v301 = vld [vmem:[%s233 + $0x70] sm:$0xf]
        %v302 = vld [vmem:[%s233 + $0x74] sm:$0xf]
        %v303 = vld [vmem:[%s233 + $0x78] sm:$0xf]
        %v304 = vld [vmem:[%s233 + $0x7c] sm:$0xf]
        %v305 = vld [vmem:[%s233 + $0x80] sm:$0xf]
        %v306 = vld [vmem:[%s233 + $0x84] sm:$0xf]
        %v307 = vld [vmem:[%s233 + $0x88] sm:$0xf]
        %v308 = vld [vmem:[%s233 + $0x8c] sm:$0xf]
        %v309 = vld [vmem:[%s233 + $0x90] sm:$0xf]
        %v310 = vld [vmem:[%s233 + $0x94] sm:$0xf]
        %v311 = vld [vmem:[%s233 + $0x98] sm:$0xf]
        %v312 = vld [vmem:[%s233 + $0x9c] sm:$0xf]
        %v313 = vld [vmem:[%s233 + $0xa0] sm:$0xf]
        %v314 = vld [vmem:[%s233 + $0xa4] sm:$0xf]
        %v315 = vld [vmem:[%s233 + $0xa8] sm:$0xf]
        %v316 = vld [vmem:[%s233 + $0xac] sm:$0xf]
        %v317 = vld [vmem:[%s233 + $0xb0] sm:$0xf]
        %v318 = vld [vmem:[%s233 + $0xb4] sm:$0xf]
        %v319 = vld [vmem:[%s233 + $0xb8] sm:$0xf]
        %v320 = vld [vmem:[%s233 + $0xbc] sm:$0xf]
        %v321 = vld [vmem:[%s233 + $0xc0] sm:$0xf]
        %v322 = vld [vmem:[%s233 + $0xc4] sm:$0xf]
        %v323 = vld [vmem:[%s233 + $0xc8] sm:$0xf]
        %v324 = vld [vmem:[%s233 + $0xcc] sm:$0xf]
        %v325 = vld [vmem:[%s233 + $0xd0] sm:$0xf]
        %v326 = vld [vmem:[%s233 + $0xd4] sm:$0xf]
        %v327 = vld [vmem:[%s233 + $0xd8] sm:$0xf]
        %v328 = vld [vmem:[%s233 + $0xdc] sm:$0xf]
        %v329 = vld [vmem:[%s233 + $0xe0] sm:$0xf]
        %v330 = vld [vmem:[%s233 + $0xe4] sm:$0xf]
        %v331 = vld [vmem:[%s233 + $0xe8] sm:$0xf]
        %v332 = vld [vmem:[%s233 + $0xec] sm:$0xf]
        %v333 = vld [vmem:[%s233 + $0xf0] sm:$0xf]
        %v334 = vld [vmem:[%s233 + $0xf4] sm:$0xf]
        %v335 = vld [vmem:[%s233 + $0xf8] sm:$0xf]
        %v336 = vld [vmem:[%s233 + $0xfc] sm:$0xf]
        %v339 = vunpack.c.l.b16 %v271
        %v340 = vunpack.c.h.b16 %v271
        %v341 = vunpack.c.l.b16 %v272
        %v342 = vunpack.c.h.b16 %v272
        %v343 = vpack.c.b16 %v339, %v339
        %v344 = vpack.c.b16 %v340, %v340
        %v345 = vpack.c.b16 %v341, %v341
        %v346 = vpack.c.b16 %v342, %v342
        %v415 = vunpack.c.l.b16 %v273
        %v416 = vunpack.c.l.b16 %v274
        %v417 = vunpack.c.l.b16 %v275
        %v418 = vunpack.c.l.b16 %v276
        %v419 = vunpack.c.l.b16 %v277
        %v420 = vunpack.c.l.b16 %v278
        %v421 = vunpack.c.l.b16 %v279
        %v422 = vunpack.c.l.b16 %v280
        %v423 = vunpack.c.l.b16 %v281
        %v424 = vunpack.c.l.b16 %v282
        %v425 = vunpack.c.l.b16 %v283
        %v426 = vunpack.c.l.b16 %v284
        %v427 = vunpack.c.l.b16 %v285
        %v428 = vunpack.c.l.b16 %v286
        %v429 = vunpack.c.l.b16 %v287
        %v430 = vunpack.c.l.b16 %v288
        %v431 = vunpack.c.l.b16 %v289
        %v432 = vunpack.c.l.b16 %v290
        %v433 = vunpack.c.l.b16 %v291
        %v434 = vunpack.c.l.b16 %v292
        %v435 = vunpack.c.l.b16 %v293
        %v436 = vunpack.c.l.b16 %v294
        %v437 = vunpack.c.l.b16 %v295
        %v438 = vunpack.c.l.b16 %v296
        %v439 = vunpack.c.l.b16 %v297
        %v440 = vunpack.c.l.b16 %v298
        %v441 = vunpack.c.l.b16 %v299
        %v442 = vunpack.c.l.b16 %v300
        %v443 = vunpack.c.l.b16 %v301
        %v444 = vunpack.c.l.b16 %v302
        %v445 = vunpack.c.l.b16 %v303
        %v446 = vunpack.c.l.b16 %v304
        %v447 = vunpack.c.l.b16 %v305
        %v448 = vunpack.c.l.b16 %v306
        %v449 = vunpack.c.l.b16 %v307
        %v450 = vunpack.c.l.b16 %v308
        %v451 = vunpack.c.l.b16 %v309
        %v452 = vunpack.c.l.b16 %v310
        %v453 = vunpack.c.l.b16 %v311
        %v454 = vunpack.c.l.b16 %v312
        %v455 = vunpack.c.l.b16 %v313
        %v456 = vunpack.c.l.b16 %v314
        %v457 = vunpack.c.l.b16 %v315
        %v458 = vunpack.c.l.b16 %v316
        %v459 = vunpack.c.l.b16 %v317
        %v460 = vunpack.c.l.b16 %v318
        %v461 = vunpack.c.l.b16 %v319
        %v462 = vunpack.c.l.b16 %v320
        %v463 = vunpack.c.l.b16 %v321
        %v464 = vunpack.c.l.b16 %v322
        %v465 = vunpack.c.l.b16 %v323
        %v466 = vunpack.c.l.b16 %v324
        %v467 = vunpack.c.l.b16 %v325
        %v468 = vunpack.c.l.b16 %v326
        %v469 = vunpack.c.l.b16 %v327
        %v470 = vunpack.c.l.b16 %v328
        %v471 = vunpack.c.l.b16 %v329
        %v472 = vunpack.c.l.b16 %v330
        %v473 = vunpack.c.l.b16 %v331
        %v474 = vunpack.c.l.b16 %v332
        %v475 = vunpack.c.l.b16 %v333
        %v476 = vunpack.c.l.b16 %v334
        %v477 = vunpack.c.l.b16 %v335
        %v478 = vunpack.c.l.b16 %v336
        %v479 = vpack.c.b16 %v416, %v415
        %v480 = vpack.c.b16 %v418, %v417
        %v481 = vpack.c.b16 %v420, %v419
        %v482 = vpack.c.b16 %v422, %v421
        %v483 = vpack.c.b16 %v424, %v423
        %v484 = vpack.c.b16 %v426, %v425
        %v485 = vpack.c.b16 %v428, %v427
        %v486 = vpack.c.b16 %v430, %v429
        %v487 = vpack.c.b16 %v432, %v431
        %v488 = vpack.c.b16 %v434, %v433
        %v489 = vpack.c.b16 %v436, %v435
        %v490 = vpack.c.b16 %v438, %v437
        %v491 = vpack.c.b16 %v440, %v439
        %v492 = vpack.c.b16 %v442, %v441
        %v493 = vpack.c.b16 %v444, %v443
        %v494 = vpack.c.b16 %v446, %v445
        %v495 = vpack.c.b16 %v448, %v447
        %v496 = vpack.c.b16 %v450, %v449
        %v497 = vpack.c.b16 %v452, %v451
        %v498 = vpack.c.b16 %v454, %v453
        %v499 = vpack.c.b16 %v456, %v455
        %v500 = vpack.c.b16 %v458, %v457
        %v501 = vpack.c.b16 %v460, %v459
        %v502 = vpack.c.b16 %v462, %v461
        %v503 = vpack.c.b16 %v464, %v463
        %v504 = vpack.c.b16 %v466, %v465
        %v505 = vpack.c.b16 %v468, %v467
        %v506 = vpack.c.b16 %v470, %v469
        %v507 = vpack.c.b16 %v472, %v471
        %v508 = vpack.c.b16 %v474, %v473
        %v509 = vpack.c.b16 %v476, %v475
        %v510 = vpack.c.b16 %v478, %v477
        %543 = vmatprep.subr.bf16.mxu0 0
        %544 = vmatpush1.bf16.msra.mxu0 %v479
        %545 = vmatprep.subr.bf16.mxu0 0
        %546 = vmatpush1.bf16.msra.mxu0 %v480
        %547 = vmatprep.subr.bf16.mxu0 0
        %548 = vmatpush1.bf16.msra.mxu0 %v481
        %549 = vmatprep.subr.bf16.mxu0 0
        %550 = vmatpush1.bf16.msra.mxu0 %v482
        %551 = vmatprep.subr.bf16.mxu0 0
        %552 = vmatpush1.bf16.msra.mxu0 %v483
        %553 = vmatprep.subr.bf16.mxu0 0
        %554 = vmatpush1.bf16.msra.mxu0 %v484
        %555 = vmatprep.subr.bf16.mxu0 0
        %556 = vmatpush1.bf16.msra.mxu0 %v485
        %557 = vmatprep.subr.bf16.mxu0 0
        %558 = vmatpush1.bf16.msra.mxu0 %v486
        %559 = vmatprep.subr.bf16.mxu0 0
        %560 = vmatpush1.bf16.msra.mxu0 %v487
        %561 = vmatprep.subr.bf16.mxu0 0
        %562 = vmatpush1.bf16.msra.mxu0 %v488
        %563 = vmatprep.subr.bf16.mxu0 0
        %564 = vmatpush1.bf16.msra.mxu0 %v489
        %565 = vmatprep.subr.bf16.mxu0 0
        %566 = vmatpush1.bf16.msra.mxu0 %v490
        %567 = vmatprep.subr.bf16.mxu0 0
        %568 = vmatpush1.bf16.msra.mxu0 %v491
        %569 = vmatprep.subr.bf16.mxu0 0
        %570 = vmatpush1.bf16.msra.mxu0 %v492
        %571 = vmatprep.subr.bf16.mxu0 0
        %572 = vmatpush1.bf16.msra.mxu0 %v493
        %573 = vmatprep.subr.bf16.mxu0 0
        %574 = vmatpush1.bf16.msra.mxu0 %v494
        %575 = vmatprep.mubr.bf16.mxu0 %v344
        %576 = vmatmul.mubr.bf16.gmra.mrb[0].mxu0 %v343
        %v577 = vpop.f32.mrb[0].mxu0
        %v578 = vadd.f32 0.0, %v577
        %v579 = vpop.f32.mrb[0].mxu0
        %v580 = vpop.f32.mrb[0].mxu0
        %v581 = vpop.f32.mrb[0].mxu0
        %582 = vdwg.mxu0
        %583 = vmatprep.subr.bf16.mxu0 0
        %584 = vmatpush1.bf16.msra.mxu0 %v495
        %585 = vmatprep.subr.bf16.mxu0 0
        %586 = vmatpush1.bf16.msra.mxu0 %v496
        %587 = vmatprep.subr.bf16.mxu0 0
        %588 = vmatpush1.bf16.msra.mxu0 %v497
        %589 = vmatprep.subr.bf16.mxu0 0
        %590 = vmatpush1.bf16.msra.mxu0 %v498
        %591 = vmatprep.subr.bf16.mxu0 0
        %592 = vmatpush1.bf16.msra.mxu0 %v499
        %593 = vmatprep.subr.bf16.mxu0 0
        %594 = vmatpush1.bf16.msra.mxu0 %v500
        %595 = vmatprep.subr.bf16.mxu0 0
        %596 = vmatpush1.bf16.msra.mxu0 %v501
        %597 = vmatprep.subr.bf16.mxu0 0
        %598 = vmatpush1.bf16.msra.mxu0 %v502
        %599 = vmatprep.subr.bf16.mxu0 0
        %600 = vmatpush1.bf16.msra.mxu0 %v503
        %601 = vmatprep.subr.bf16.mxu0 0
        %602 = vmatpush1.bf16.msra.mxu0 %v504
        %603 = vmatprep.subr.bf16.mxu0 0
        %604 = vmatpush1.bf16.msra.mxu0 %v505
        %605 = vmatprep.subr.bf16.mxu0 0
        %606 = vmatpush1.bf16.msra.mxu0 %v506
        %607 = vmatprep.subr.bf16.mxu0 0
        %608 = vmatpush1.bf16.msra.mxu0 %v507
        %609 = vmatprep.subr.bf16.mxu0 0
        %610 = vmatpush1.bf16.msra.mxu0 %v508
        %611 = vmatprep.subr.bf16.mxu0 0
        %612 = vmatpush1.bf16.msra.mxu0 %v509
        %613 = vmatprep.subr.bf16.mxu0 0
        %614 = vmatpush1.bf16.msra.mxu0 %v510
        %615 = vmatprep.mubr.bf16.mxu0 %v346
        %616 = vmatmul.mubr.bf16.gmra.mrb[0].mxu0 %v345
        %v617 = vpop.f32.mrb[0].mxu0
        %v618 = vadd.f32 %v578, %v617
        %v619 = vpop.f32.mrb[0].mxu0
        %v620 = vpop.f32.mrb[0].mxu0
        %v621 = vpop.f32.mrb[0].mxu0
        %622 = vdwg.mxu0
        %v623 = vadd.f32 %v270, %v618
        %624 = vst [vmem:[#allocation2] sm:$0xff] %v623
        %p625 = scmp.eq.s32.totalorder %s28, 1
        // Predicated region
        $region45: #{tpu_custom_call.1} parent=31 // pred_check
          %p626 = pneg %p625
        $region46: #{tpu_custom_call.1} parent=31 // pred_check_branch
          %628 = sbr.rel (%p626) target = $region48
        $region47: #{tpu_custom_call.1} parent=31 // pred_region
          %v629 = vld [vmem:[#allocation2] sm:$0xff]
          %v630 = vld [vmem:[%s263] sm:$0x1]
          %v632 = vlaneseq
          %v633 = vshrl.u32 %v632, 7
          %v634 = vsub.s32 0, %v633
          %v635 = vrot.slane %v630, %v634
          %v637 = vadd.f32 %v629, %v635
          %638 = vst [vmem:[#allocation8] sm:$0xff] %v637
        $region48: #{tpu_custom_call.1} parent=31 // pred_fallthru
          _
        // Predicated region
        $region49: #{tpu_custom_call.1} parent=31 // pred_check
          %p639 = pneg %p142
        $region50: #{tpu_custom_call.1} parent=31 // pred_check_branch
          %641 = sbr.rel (%p639) target = $region52
        $region51: #{tpu_custom_call.1} parent=31 // pred_region
          %s643 = ssub.s32 128, 128
          %644 = vsyncadd [#allocation5], %s643
          %s645 = sadd.s32 %s27, %s26
          %s646 = smul.addr %s645, 128
          %s647 = scalar_lea.hbm %s3, %s646
          %s649 = sshll.u32 [#allocation8], 4
          %s650 = int_to_ptr.vmem [resolvable:$true] %s649
          %652 = dma.vmem_to_hbm [thread:$0]  %s650, 128, %s647, [#allocation5]
        $region52: #{tpu_custom_call.1} parent=31 // pred_fallthru
          _
        // Predicated region
        $region53: #{tpu_custom_call.1} parent=31 // pred_check
          %p653 = pneg %p142
        $region54: #{tpu_custom_call.1} parent=31 // pred_check_branch
          %655 = sbr.rel (%p653) target = $region56
        $region55: #{tpu_custom_call.1} parent=31 // pred_region
          %656 = dma.done [#allocation5], 128
        $region56: #{tpu_custom_call.1} parent=31 // pred_fallthru
          _
      $region32: #{tpu_custom_call.1} parent=5 // pred_fallthru
        _
      %p657 = scmp.le.s32.totalorder 2, %s16
      // Predicated region
      $region57: #{tpu_custom_call.1} parent=5 // pred_check
        %p658 = pneg %p657
      $region58: #{tpu_custom_call.1} parent=5 // pred_check_branch
        %660 = sbr.rel (%p658) target = $region60
      $region59: #{tpu_custom_call.1} parent=5 // pred_region
        %s661 = ssub.s32 %s16, 2
      $region60: #{tpu_custom_call.1} parent=5 // pred_fallthru
        _
    $region6: #{tpu_custom_call.1} parent=1 // loop_footer
      %s20 = sadd.s32 1, %s16
    $region7: #{tpu_custom_call.1} parent=1 // loop_footer_branch
      %15 = sbr.rel target = $region3
    $region8: #{tpu_custom_call.1} parent=1 // loop_exit
      _
    %662 = vsyncpa [#allocation4], 1
    %s663 = scalar_lea.sflag [#allocation4], 1
    %664 = vsyncpa %s663, 1
    %665 = vsyncpa [#allocation7], 1
    %s666 = scalar_lea.sflag [#allocation7], 1
    %667 = vsyncpa %s666, 1
    %668 = vsyncpa [#allocation5], 1
    %s669 = scalar_lea.sflag [#allocation5], 1
    %670 = vsyncpa %s669, 1

</llo_original>
